<compile_context>
chip_gen: v5e
topology: v5e:2x2
jax: 0.10.0
libtpu: 0.0.40
codegen_flags: <defaults>
</compile_context>

<pallas_src>
import jax
import jax.numpy as jnp
from jax.experimental import pallas as pl
from jax.experimental.pallas import tpu as pltpu

_VMEM_LIMIT = 48 * 1024 * 1024  # safe on v5e/v6e (128 MiB) and v7x (64 MiB) alike


def mlm_stats_kernel(x_ref, w_ref, b_ref, m_out_ref, l_out_ref, m_sc, l_sc):
    """Pass 1: online max / sum-of-exp over streamed vocab tiles."""
    v = pl.program_id(1)

    @pl.when(v == 0)
    def _():
        m_sc[...] = jnp.full(m_sc.shape, -jnp.inf, dtype=jnp.float32)
        l_sc[...] = jnp.zeros(l_sc.shape, dtype=jnp.float32)

    # bf16 x bf16 -> f32 accumulation on the MXU
    logits = jnp.dot(x_ref[...], w_ref[...], preferred_element_type=jnp.float32)
    logits = logits + b_ref[...]                      # (tm, tv) + (1, tv)

    m_prev = m_sc[...]
    m_new = jnp.maximum(m_prev, jnp.max(logits, axis=-1, keepdims=True))
    alpha = jnp.exp(m_prev - m_new)                   # rescale running sum
    l_sc[...] = alpha * l_sc[...] + jnp.sum(jnp.exp(logits - m_new),
                                            axis=-1, keepdims=True)
    m_sc[...] = m_new

    @pl.when(v == pl.num_programs(1) - 1)
    def _():
        m_out_ref[...] = m_sc[...]
        l_out_ref[...] = l_sc[...]


def mlm_out_kernel(x_ref, w_ref, b_ref, m_ref, l_ref, o_ref):
    """Pass 2: recompute logit tile, normalize with row stats, write lane-dense tile."""
    logits = jnp.dot(x_ref[...], w_ref[...], preferred_element_type=jnp.float32)
    logits = logits + b_ref[...]

    p = jnp.exp(logits - m_ref[...])                  # (tm, tv), f32
    inv_l = pl.reciprocal(l_ref[...], approx=True)    # EUP vrcp (free slot)
    inv_l = inv_l * (2.0 - l_ref[...] * inv_l)        # one Newton step -> ~f32 accuracy
    o_ref[...] = (p * inv_l).astype(o_ref.dtype)


def _pick_tile(dim, target, align):
    """Largest tile <= target that divides `dim` and is a multiple of `align`
    (falls back to the full dim when no such tile exists or dim is small)."""
    if dim <= target:
        return dim
    t = (target // align) * align
    while t >= align:
        if dim % t == 0:
            return t
        t -= align
    return dim


def masked_language_model(x, weight, bias, *, tm_target=256, tv_target=2048):
    """x: (batch, seq, d_model) f32; weight: (vocab, d_model) f32 (PyTorch Linear
    layout); bias: (vocab,) f32.  Returns softmax(x @ weight.T + bias) in f32."""
    batch, seq, d_model = x.shape
    vocab = weight.shape[0]
    M = batch * seq

    # bf16 for the two big input HBM streams / native MXU rate; softmax stays f32.
    x2d = x.reshape(M, d_model).astype(jnp.bfloat16)
    w = weight.T.astype(jnp.bfloat16)                 # (d_model, vocab)
    b2d = bias.reshape(1, vocab).astype(jnp.float32)

    tm = _pick_tile(M, tm_target, 8)
    tv = _pick_tile(vocab, tv_target, 128)
    grid = (M // tm, vocab // tv)

    # ---- Pass 1: per-row max and sum-of-exp (streaming over vocab tiles) ----
    m_rows, l_rows = pl.pallas_call(
        mlm_stats_kernel,
        out_shape=(jax.ShapeDtypeStruct((M, 1), jnp.float32),
                   jax.ShapeDtypeStruct((M, 1), jnp.float32)),
        grid_spec=pltpu.PrefetchScalarGridSpec(
            num_scalar_prefetch=0,
            grid=grid,
            in_specs=[
                pl.BlockSpec((tm, d_model), lambda m, v: (m, 0)),   # x row block
                pl.BlockSpec((d_model, tv), lambda m, v: (0, v)),   # W vocab tile
                pl.BlockSpec((1, tv), lambda m, v: (0, v)),         # bias (V-only)
            ],
            out_specs=[
                pl.BlockSpec((tm, 1), lambda m, v: (m, 0)),         # row max
                pl.BlockSpec((tm, 1), lambda m, v: (m, 0)),         # row sum-of-exp
            ],
            scratch_shapes=[pltpu.VMEM((tm, 1), jnp.float32),
                            pltpu.VMEM((tm, 1), jnp.float32)],
        ),
        compiler_params=pltpu.CompilerParams(
            dimension_semantics=("parallel", "arbitrary"),
            vmem_limit_bytes=_VMEM_LIMIT,
        ),
    )(x2d, w, b2d)

    # ---- Pass 2: normalized softmax tiles, lane-dense output writes ----
    out = pl.pallas_call(
        mlm_out_kernel,
        out_shape=jax.ShapeDtypeStruct((M, vocab), jnp.float32),
        grid_spec=pltpu.PrefetchScalarGridSpec(
            num_scalar_prefetch=0,
            grid=grid,
            in_specs=[
                pl.BlockSpec((tm, d_model), lambda m, v: (m, 0)),
                pl.BlockSpec((d_model, tv), lambda m, v: (0, v)),
                pl.BlockSpec((1, tv), lambda m, v: (0, v)),
                pl.BlockSpec((tm, 1), lambda m, v: (m, 0)),         # row max
                pl.BlockSpec((tm, 1), lambda m, v: (m, 0)),         # row denom
            ],
            out_specs=pl.BlockSpec((tm, tv), lambda m, v: (m, v)),
        ),
        compiler_params=pltpu.CompilerParams(
            dimension_semantics=("parallel", "parallel"),
            vmem_limit_bytes=_VMEM_LIMIT,
        ),
    )(x2d, w, b2d, m_rows, l_rows)

    return out.reshape(batch, seq, vocab)


if __name__ == "__main__":
    # Small shapes consistent with the module's forward.
    batch, seq, d_model, vocab_size = 2, 8, 32, 128

    key = jax.random.PRNGKey(0)
    kx, kw, kb = jax.random.split(key, 3)

    x = jax.random.normal(kx, (batch, seq, d_model), dtype=jnp.float32)
    # PyTorch nn.Linear(d_model, vocab_size) parameter layout: (vocab, d_model), (vocab,)
    weight = jax.random.normal(kw, (vocab_size, d_model), dtype=jnp.float32) * 0.05
    bias = jax.random.normal(kb, (vocab_size,), dtype=jnp.float32) * 0.01

    y = masked_language_model(x, weight, bias)
    y = jax.block_until_ready(y)

    # Reference with the same bf16 input rounding the kernel uses (f32 everywhere else).
    x_r = x.astype(jnp.bfloat16).astype(jnp.float32)
    w_r = weight.astype(jnp.bfloat16).astype(jnp.float32)
    logits_ref = jnp.einsum("bsd,vd->bsv", x_r, w_r) + bias
    ref = jax.nn.softmax(logits_ref, axis=-1)

    assert y.shape == (batch, seq, vocab_size)
    assert y.dtype == jnp.float32
    assert jnp.allclose(jnp.sum(y, axis=-1), 1.0, atol=1e-3)
    assert jnp.allclose(y, ref, atol=5e-3, rtol=5e-3)

    print("KERNEL_OK")
</pallas_src>

<mosaic_0001>
module attributes {stable_mosaic.version = 11 : i64} {
  func.func @mlm_stats_kernel(%arg0: i32, %arg1: i32, %arg2: memref<16x32xbf16, #tpu.memory_space<vmem>>, %arg3: memref<32x128xbf16, #tpu.memory_space<vmem>>, %arg4: memref<1x128xf32, #tpu.memory_space<vmem>>, %arg5: memref<16x1xf32, #tpu.memory_space<vmem>>, %arg6: memref<16x1xf32, #tpu.memory_space<vmem>>, %arg7: memref<16x1xf32, #tpu.memory_space<vmem>>, %arg8: memref<16x1xf32, #tpu.memory_space<vmem>>) attributes {dimension_semantics = [#tpu.dimension_semantics<parallel>, #tpu.dimension_semantics<arbitrary>], iteration_bounds = array<i64: 1, 1>, scalar_prefetch = 0 : i64, scratch_operands = 2 : i64, tpu.core_type = #tpu.core_type<tc>, window_params = [{transform_indices = @transform_0, window_bounds = array<i64: 16, 32>}, {transform_indices = @transform_1, window_bounds = array<i64: 32, 128>}, {transform_indices = @transform_2, window_bounds = array<i64: 1, 128>}, {transform_indices = @transform_3, window_bounds = array<i64: 16, 1>}, {transform_indices = @transform_4, window_bounds = array<i64: 16, 1>}]} {
    %c0_i32 = arith.constant 0 : i32
    %0 = arith.cmpi eq, %arg1, %c0_i32 : i32
    %1 = arith.extui %0 : i1 to i32
    %c0_i32_0 = arith.constant 0 : i32
    %2 = arith.cmpi ne, %1, %c0_i32_0 : i32
    scf.if %2 {
      %cst_18 = arith.constant 0xFF800000 : f32
      %28 = vector.broadcast %cst_18 : f32 to vector<16x1xf32>
      %c0_19 = arith.constant 0 : index
      %c0_20 = arith.constant 0 : index
      %29 = vector.load %arg7[%c0_19, %c0_20] : memref<16x1xf32, #tpu.memory_space<vmem>>, vector<16x1xf32>
      tpu.vector_store %arg7[%c0_19, %c0_20], %28 {strides = array<i32>} : memref<16x1xf32, #tpu.memory_space<vmem>>, vector<16x1xf32>,
      %cst_21 = arith.constant 0.000000e+00 : f32
      %30 = vector.broadcast %cst_21 : f32 to vector<16x1xf32>
      %c0_22 = arith.constant 0 : index
      %c0_23 = arith.constant 0 : index
      %31 = vector.load %arg8[%c0_22, %c0_23] : memref<16x1xf32, #tpu.memory_space<vmem>>, vector<16x1xf32>
      tpu.vector_store %arg8[%c0_22, %c0_23], %30 {strides = array<i32>} : memref<16x1xf32, #tpu.memory_space<vmem>>, vector<16x1xf32>,
    } else {
    }
    %c0 = arith.constant 0 : index
    %c0_1 = arith.constant 0 : index
    %3 = vector.load %arg2[%c0, %c0_1] : memref<16x32xbf16, #tpu.memory_space<vmem>>, vector<16x32xbf16>
    %c0_2 = arith.constant 0 : index
    %c0_3 = arith.constant 0 : index
    %4 = vector.load %arg3[%c0_2, %c0_3] : memref<32x128xbf16, #tpu.memory_space<vmem>>, vector<32x128xbf16>
    %cst = arith.constant dense<0.000000e+00> : vector<16x128xf32>
    %5 = tpu.matmul %3, %4, %cst {dimension_numbers = #tpu.dot_dimension_numbers<[1], [0], [0], [1], [0, 0, 1, 1], [], []>} : vector<16x32xbf16>, vector<32x128xbf16>, vector<16x128xf32> -> vector<16x128xf32>
    %c0_4 = arith.constant 0 : index
    %c0_5 = arith.constant 0 : index
    %6 = vector.load %arg4[%c0_4, %c0_5] : memref<1x128xf32, #tpu.memory_space<vmem>>, vector<1x128xf32>
    %7 = vector.broadcast %6 : vector<1x128xf32> to vector<16x128xf32>
    %8 = arith.addf %5, %7 : vector<16x128xf32>
    %c0_6 = arith.constant 0 : index
    %c0_7 = arith.constant 0 : index
    %9 = vector.load %arg7[%c0_6, %c0_7] : memref<16x1xf32, #tpu.memory_space<vmem>>, vector<16x1xf32>
    %cst_8 = arith.constant dense<0xFF800000> : vector<16xf32>
    %10 = vector.multi_reduction <maximumf>, %8, %cst_8 [1] : vector<16x128xf32> to vector<16xf32>
    %11 = vector.shape_cast %10 : vector<16xf32> to vector<16x1xf32>
    %12 = arith.maximumf %9, %11 : vector<16x1xf32>
    %13 = arith.subf %9, %12 : vector<16x1xf32>
    %14 = math.exp %13 : vector<16x1xf32>
    %c0_9 = arith.constant 0 : index
    %c0_10 = arith.constant 0 : index
    %15 = vector.load %arg8[%c0_9, %c0_10] : memref<16x1xf32, #tpu.memory_space<vmem>>, vector<16x1xf32>
    %16 = arith.mulf %14, %15 : vector<16x1xf32>
    %17 = vector.broadcast %12 : vector<16x1xf32> to vector<16x128xf32>
    %18 = arith.subf %8, %17 : vector<16x128xf32>
    %19 = math.exp %18 : vector<16x128xf32>
    %cst_11 = arith.constant dense<0.000000e+00> : vector<16xf32>
    %20 = vector.multi_reduction <add>, %19, %cst_11 [1] : vector<16x128xf32> to vector<16xf32>
    %21 = vector.shape_cast %20 : vector<16xf32> to vector<16x1xf32>
    %22 = arith.addf %16, %21 : vector<16x1xf32>
    %c0_12 = arith.constant 0 : index
    %c0_13 = arith.constant 0 : index
    %23 = vector.load %arg8[%c0_12, %c0_13] : memref<16x1xf32, #tpu.memory_space<vmem>>, vector<16x1xf32>
    tpu.vector_store %arg8[%c0_12, %c0_13], %22 {strides = array<i32>} : memref<16x1xf32, #tpu.memory_space<vmem>>, vector<16x1xf32>,
    %c0_14 = arith.constant 0 : index
    %c0_15 = arith.constant 0 : index
    %24 = vector.load %arg7[%c0_14, %c0_15] : memref<16x1xf32, #tpu.memory_space<vmem>>, vector<16x1xf32>
    tpu.vector_store %arg7[%c0_14, %c0_15], %12 {strides = array<i32>} : memref<16x1xf32, #tpu.memory_space<vmem>>, vector<16x1xf32>,
    %c0_i32_16 = arith.constant 0 : i32
    %25 = arith.cmpi eq, %arg1, %c0_i32_16 : i32
    %26 = arith.extui %25 : i1 to i32
    %c0_i32_17 = arith.constant 0 : i32
    %27 = arith.cmpi ne, %26, %c0_i32_17 : i32
    scf.if %27 {
      %c0_18 = arith.constant 0 : index
      %c0_19 = arith.constant 0 : index
      %28 = vector.load %arg7[%c0_18, %c0_19] : memref<16x1xf32, #tpu.memory_space<vmem>>, vector<16x1xf32>
      %c0_20 = arith.constant 0 : index
      %c0_21 = arith.constant 0 : index
      %29 = vector.load %arg5[%c0_20, %c0_21] : memref<16x1xf32, #tpu.memory_space<vmem>>, vector<16x1xf32>
      tpu.vector_store %arg5[%c0_20, %c0_21], %28 {strides = array<i32>} : memref<16x1xf32, #tpu.memory_space<vmem>>, vector<16x1xf32>,
      %c0_22 = arith.constant 0 : index
      %c0_23 = arith.constant 0 : index
      %30 = vector.load %arg8[%c0_22, %c0_23] : memref<16x1xf32, #tpu.memory_space<vmem>>, vector<16x1xf32>
      %c0_24 = arith.constant 0 : index
      %c0_25 = arith.constant 0 : index
      %31 = vector.load %arg6[%c0_24, %c0_25] : memref<16x1xf32, #tpu.memory_space<vmem>>, vector<16x1xf32>
      tpu.vector_store %arg6[%c0_24, %c0_25], %30 {strides = array<i32>} : memref<16x1xf32, #tpu.memory_space<vmem>>, vector<16x1xf32>,
    } else {
    }
    return
  }
  func.func @transform_0(%arg0: i32, %arg1: i32) -> (i32, i32) {
    %c0_i32 = arith.constant 0 : i32
    %c0_i32_0 = arith.constant 0 : i32
    return %arg0, %c0_i32 : i32, i32
  }
  func.func @transform_1(%arg0: i32, %arg1: i32) -> (i32, i32) {
    %c0_i32 = arith.constant 0 : i32
    %c0_i32_0 = arith.constant 0 : i32
    return %c0_i32, %arg1 : i32, i32
  }
  func.func @transform_2(%arg0: i32, %arg1: i32) -> (i32, i32) {
    %c0_i32 = arith.constant 0 : i32
    %c0_i32_0 = arith.constant 0 : i32
    return %c0_i32, %arg1 : i32, i32
  }
  func.func @transform_3(%arg0: i32, %arg1: i32) -> (i32, i32) {
    %c0_i32 = arith.constant 0 : i32
    %c0_i32_0 = arith.constant 0 : i32
    return %arg0, %c0_i32 : i32, i32
  }
  func.func @transform_4(%arg0: i32, %arg1: i32) -> (i32, i32) {
    %c0_i32 = arith.constant 0 : i32
    %c0_i32_0 = arith.constant 0 : i32
    return %arg0, %c0_i32 : i32, i32
  }
}

</mosaic_0001>

<llo_original>
// kernel: tpu_custom_call.1
$region0: #{tpu_custom_call.1}
  #allocation0 [shape = 'u32[]', space=smem, size = 0x4, offset = 0x4, fixed_abs, tag = 'smem constant byte address 0x4 - core index']
  #allocation1 [shape = 'u32[72,128]{1,0:T(1,128)}', space=vmem, size = 0x9000, scoped, tag = 'internal scratch']
  #allocation2 [shape = 'f32[16,1]{1,0:T(8,128)}', space=vmem, size = 0x2000, scoped, tag = 'scratch operand']
  #allocation3 [shape = 'f32[16,1]{1,0:T(8,128)}', space=vmem, size = 0x2000, scoped, tag = 'scratch operand']
  %s0 = inlined_call_operand.hbm [shape: bf16[16,32], index: 0, kind: input, shape index: {}]
  %s1 = inlined_call_operand.hbm [shape: bf16[32,128], index: 1, kind: input, shape index: {}]
  %s2 = inlined_call_operand.vmem [shape: f32[1,128], index: 2, kind: input, shape index: {}]
  %s3 = inlined_call_operand.vmem [shape: f32[16,1], index: 3, kind: output, shape index: {0}]
  %s4 = inlined_call_operand.vmem [shape: f32[16,1], index: 4, kind: output, shape index: {1}]
  %5 = xla_tuple %s3, %s4
  %s6 = sld [smem:[#allocation0]]
  $region46: #{tpu_custom_call.1} parent=0
    _
  %s8 = ssub.s32 1, %s6
  %s9 = scalar_select 0, %s8, %s6
  $region1: #{tpu_custom_call.1} parent=0
    #allocation4 [shape = 'u8[4096]{0}', space=vmem, size = 0x1000, scoped, tag = 'input window, operand 0, single buffered']
    #allocation5 [shape = 's32[1]{0}', space=sflag, size = 0x4, scoped, tag = 'scoped memory for tpu_custom_call.1']
    #allocation6 [shape = 'u8[8192]{0}', space=vmem, size = 0x2000, scoped, tag = 'input window, operand 1, single buffered']
    #allocation7 [shape = 's32[1]{0}', space=sflag, size = 0x4, scoped, tag = 'scoped memory for tpu_custom_call.1']
    %10 = vsyncpa [#allocation5], 0
    %11 = vsyncpa [#allocation7], 0
    // Predicated region
    $region2: #{tpu_custom_call.1} parent=1 // pred_check
      _
    $region3: #{tpu_custom_call.1} parent=1 // pred_check_branch
      %13 = sbr.rel (0) target = $region5
    $region4: #{tpu_custom_call.1} parent=1 // pred_region
      %15 = vsyncadd [#allocation5], 0
      %s16 = sshll.u32 %s0, 4
      %s17 = int_to_ptr.hbm [resolvable:$true] %s16
      %s18 = sshll.u32 [#allocation4], 4
      %s19 = int_to_ptr.vmem [resolvable:$true] %s18
      %24 = dma.hbm_to_vmem [thread:$0]  %s17, 128, %s19, [#allocation5], 64, 64, 4
    $region5: #{tpu_custom_call.1} parent=1 // pred_fallthru
      _
    // Predicated region
    $region6: #{tpu_custom_call.1} parent=1 // pred_check
      _
    $region7: #{tpu_custom_call.1} parent=1 // pred_check_branch
      %26 = sbr.rel (0) target = $region9
    $region8: #{tpu_custom_call.1} parent=1 // pred_region
      %28 = vsyncadd [#allocation7], 0
      %s29 = sshll.u32 %s1, 4
      %s30 = int_to_ptr.hbm [resolvable:$true] %s29
      %s31 = sshll.u32 [#allocation6], 4
      %s32 = int_to_ptr.vmem [resolvable:$true] %s31
      %37 = dma.hbm_to_vmem [thread:$0]  %s30, 256, %s32, [#allocation7], 64, 64, 4
    $region9: #{tpu_custom_call.1} parent=1 // pred_fallthru
      _
    // Predicated region
    $region10: #{tpu_custom_call.1} parent=1 // pred_check
      _
    $region11: #{tpu_custom_call.1} parent=1 // pred_check_branch
      %39 = sbr.rel (0) target = $region13
    $region12: #{tpu_custom_call.1} parent=1 // pred_region
      _
    $region13: #{tpu_custom_call.1} parent=1 // pred_fallthru
      _
    // Predicated region
    $region14: #{tpu_custom_call.1} parent=1 // pred_check
      _
    $region15: #{tpu_custom_call.1} parent=1 // pred_check_branch
      %41 = sbr.rel (0) target = $region17
    $region16: #{tpu_custom_call.1} parent=1 // pred_region
      %43 = dma.done [#allocation5], 128
    $region17: #{tpu_custom_call.1} parent=1 // pred_fallthru
      _
    // Predicated region
    $region18: #{tpu_custom_call.1} parent=1 // pred_check
      _
    $region19: #{tpu_custom_call.1} parent=1 // pred_check_branch
      %45 = sbr.rel (0) target = $region21
    $region20: #{tpu_custom_call.1} parent=1 // pred_region
      %47 = dma.done [#allocation7], 256
    $region21: #{tpu_custom_call.1} parent=1 // pred_fallthru
      _
    %p49 = scmp.eq.s32.totalorder 0, 0
    // Predicated region
    $region22: #{tpu_custom_call.1} parent=1 // pred_check
      %p50 = pneg %p49
    $region23: #{tpu_custom_call.1} parent=1 // pred_check_branch
      %52 = sbr.rel (%p50) target = $region25
    $region24: #{tpu_custom_call.1} parent=1 // pred_region
      %vm53 = vcmask 7168
      %54 = vst.msk [vmem:[#allocation2] sm:$0xff] %vm53, -inf
      %55 = vst.msk [vmem:[#allocation2 + $0x8] sm:$0xff] %vm53, -inf
      %56 = vst.msk [vmem:[#allocation3] sm:$0xff] %vm53, 0.0
      %57 = vst.msk [vmem:[#allocation3 + $0x8] sm:$0xff] %vm53, 0.0
    $region25: #{tpu_custom_call.1} parent=1 // pred_fallthru
      _
    %v58 = vld [vmem:[#allocation4] sm:$0xf]
    %v59 = vld [vmem:[#allocation4 + $0x4] sm:$0xf]
    %v60 = vld [vmem:[#allocation6] sm:$0xf]
    %v61 = vld [vmem:[#allocation6 + $0x4] sm:$0xf]
    %v62 = vld [vmem:[#allocation6 + $0x8] sm:$0xf]
    %v63 = vld [vmem:[#allocation6 + $0xc] sm:$0xf]
    %v64 = vld [vmem:[%s2] sm:$0x1]
    %v66 = vperm.slane %v64, 0
    %v70 = vunpack.c.l.b16 %v58
    %v71 = vunpack.c.l.b16 %v59
    %v72 = vpack.c.b16 %v71, %v70
    %v77 = vunpack.c.l.b16 %v60
    %v78 = vunpack.c.l.b16 %v61
    %v79 = vunpack.c.l.b16 %v62
    %v80 = vunpack.c.l.b16 %v63
    %v81 = vpack.c.b16 %v78, %v77
    %v82 = vpack.c.b16 %v80, %v79
    %vm85 = vcmask 261120
    %v87 = vsel %vm85, %v72, 0
    %89 = vmatpush.bf16.msra.mxu0 0
    %90 = vmatpush.bf16.msra.mxu0 0
    %91 = vmatpush.bf16.msra.mxu0 0
    %92 = vmatpush.bf16.msra.mxu0 0
    %93 = vmatpush.bf16.msra.mxu0 0
    %94 = vmatpush.bf16.msra.mxu0 0
    %95 = vmatpush.bf16.msra.mxu0 %v82
    %96 = vmatpush.bf16.msra.mxu0 %v81
    %97 = vmatmul.bf16.gmra.mxu0 %v87
    %v98 = vpop.f32.mrf.mxu0
    %v99 = vadd.f32 %v66, %v98
    %v100 = vpop.f32.mrf.mxu0
    %v101 = vadd.f32 %v66, %v100
    %102 = vdwg.mxu0
    %v103 = vld [vmem:[#allocation2] sm:$0xff]
    %v104 = vld [vmem:[#allocation2 + $0x8] sm:$0xff]
    %105 = vmax.xlane.f32.xlu0 %v99
    %v106 = vpop.xlane.xlu0 %105
    %107 = vmax.xlane.f32.xlu0 %v101
    %v108 = vpop.xlane.xlu0 %107
    %v109 = vmax.f32 %v103, %v106
    %v110 = vmax.f32 %v104, %v108
    %v111 = vsub.f32 %v103, %v109
    %v112 = vsub.f32 %v104, %v110
    %v113 = vmul.f32 %v111, 1.442695
    %v114 = vpow.pop %v113
    %v115 = vmul.f32 %v112, 1.442695
    %v116 = vpow.pop %v115
    %v117 = vld [vmem:[#allocation3] sm:$0xff]
    %v118 = vld [vmem:[#allocation3 + $0x8] sm:$0xff]
    %v119 = vmul.f32 %v114, %v117
    %v120 = vmul.f32 %v116, %v118
    %122 = vset.pattern.permute.xlu0 0
    %123 = vperm.xlu0 %122, %v109
    %v124 = vpop.permute.xlu0 %123
    %127 = vset.pattern.permute.xlu0 0
    %128 = vperm.xlu0 %127, %v110
    %v129 = vpop.permute.xlu0 %128
    %v131 = vsub.f32 %v99, %v124
    %v132 = vsub.f32 %v101, %v129
    %v133 = vmul.f32 %v131, 1.442695
    %v134 = vpow.pop %v133
    %v135 = vmul.f32 %v132, 1.442695
    %v136 = vpow.pop %v135
    %137 = vadd.xlane.f32.xlu0 %v134
    %v138 = vpop.xlane.xlu0 %137
    %139 = vadd.xlane.f32.xlu0 %v136
    %v140 = vpop.xlane.xlu0 %139
    %v141 = vadd.f32 %v119, %v138
    %v142 = vadd.f32 %v120, %v140
    %vm143 = vcmask 7168
    %144 = vst.msk [vmem:[#allocation3] sm:$0xff] %vm143, %v141
    %145 = vst.msk [vmem:[#allocation3 + $0x8] sm:$0xff] %vm143, %v142
    %146 = vst.msk [vmem:[#allocation2] sm:$0xff] %vm143, %v109
    %147 = vst.msk [vmem:[#allocation2 + $0x8] sm:$0xff] %vm143, %v110
    // Predicated region
    $region26: #{tpu_custom_call.1} parent=1 // pred_check
      %p148 = pneg %p49
    $region27: #{tpu_custom_call.1} parent=1 // pred_check_branch
      %150 = sbr.rel (%p148) target = $region29
    $region28: #{tpu_custom_call.1} parent=1 // pred_region
      %v151 = vld [vmem:[#allocation2] sm:$0xff]
      %v152 = vld [vmem:[#allocation2 + $0x8] sm:$0xff]
      %153 = vst.msk [vmem:[%s3] sm:$0xff] %vm143, %v151
      %154 = vst.msk [vmem:[%s3 + $0x8] sm:$0xff] %vm143, %v152
      %v155 = vld [vmem:[#allocation3] sm:$0xff]
      %v156 = vld [vmem:[#allocation3 + $0x8] sm:$0xff]
      %157 = vst.msk [vmem:[%s4] sm:$0xff] %vm143, %v155
      %158 = vst.msk [vmem:[%s4 + $0x8] sm:$0xff] %vm143, %v156
    $region29: #{tpu_custom_call.1} parent=1 // pred_fallthru
      _
    // Predicated region
    $region30: #{tpu_custom_call.1} parent=1 // pred_check
      _
    $region31: #{tpu_custom_call.1} parent=1 // pred_check_branch
      %160 = sbr.rel (0) target = $region33
    $region32: #{tpu_custom_call.1} parent=1 // pred_region
      _
    $region33: #{tpu_custom_call.1} parent=1 // pred_fallthru
      _
    // Predicated region
    $region34: #{tpu_custom_call.1} parent=1 // pred_check
      _
    $region35: #{tpu_custom_call.1} parent=1 // pred_check_branch
      %162 = sbr.rel (0) target = $region37
    $region36: #{tpu_custom_call.1} parent=1 // pred_region
      _
    $region37: #{tpu_custom_call.1} parent=1 // pred_fallthru
      _
    // Predicated region
    $region38: #{tpu_custom_call.1} parent=1 // pred_check
      _
    $region39: #{tpu_custom_call.1} parent=1 // pred_check_branch
      %164 = sbr.rel (0) target = $region41
    $region40: #{tpu_custom_call.1} parent=1 // pred_region
      _
    $region41: #{tpu_custom_call.1} parent=1 // pred_fallthru
      _
    // Predicated region
    $region42: #{tpu_custom_call.1} parent=1 // pred_check
      _
    $region43: #{tpu_custom_call.1} parent=1 // pred_check_branch
      %166 = sbr.rel (0) target = $region45
    $region44: #{tpu_custom_call.1} parent=1 // pred_region
      _
    $region45: #{tpu_custom_call.1} parent=1 // pred_fallthru
      _
    %167 = vsyncpa [#allocation5], 1
    %168 = vsyncpa [#allocation7], 1

</llo_original>
